<compile_context>
chip_gen: v5e
topology: v5e:2x2
jax: 0.10.0
libtpu: 0.0.40
codegen_flags: <defaults>
</compile_context>

<pallas_src>
import functools

import jax
import jax.numpy as jnp
from jax.experimental import pallas as pl
from jax.experimental.pallas import tpu as pltpu

_LANE = 128
_MIN_HW_TILES = 2  # keep >= 2 grid steps (when possible) for v7x's 2 TensorCores


def _fused_conv_relu_kernel(x_ref, w_ref, b_ref, o_ref):
    """o[b] = relu(W @ x[b] + b) on one lane-dense spatial slab, all batches.

    x_ref: (B, C_in, tile_hw)   channels on sublanes, spatial on lanes
    w_ref: (C_out, C_in)        fused weight (bn_scale*W_sc + W_res), resident
    b_ref: (C_out, 1)           fused bias, resident, f32
    o_ref: (B, C_out, tile_hw)
    """
    w = w_ref[...]
    bias = b_ref[...]  # (C_out, 1) f32, broadcasts over lanes
    # B is a static block dimension; unrolled per-batch 2-D matmuls keep the
    # natural (B, C, HW) HBM layout (no transposes anywhere).
    for b in range(x_ref.shape[0]):
        y = jnp.dot(w, x_ref[b], preferred_element_type=jnp.float32)
        o_ref[b] = jnp.maximum(y + bias, 0.0).astype(o_ref.dtype)


def _round_up(a, m):
    return ((a + m - 1) // m) * m


def sum_and_relu(x_nchw, params, *, stride=1, max_tile_hw=65536, io_dtype=None):
    """x_nchw: (B, C_in, H, W). Returns (B, C_out, H_out, W_out).

    io_dtype: optional narrower HBM I/O dtype (e.g. jnp.bfloat16) for the
    memory-bound path; accumulation / bias / relu stay in f32.
    """
    B, C_in, H, W = x_nchw.shape
    C_out = params["w_sc"].shape[0]

    # Fold BatchNorm (inference) and the residual conv into one weight/bias:
    #   relu((s*W_sc + W_res) @ x + (s*b_sc + shift + b_res)) -- algebraically exact.
    eps = 1e-5
    bn_scale = params["bn_gamma"] / jnp.sqrt(params["bn_var"] + eps)
    bn_shift = params["bn_beta"] - params["bn_mean"] * bn_scale
    w_fused = params["w_sc"] * bn_scale[:, None] + params["w_res"]    # (C_out, C_in)
    b_fused = params["b_sc"] * bn_scale + bn_shift + params["b_res"]  # (C_out,)

    # 1x1 conv with stride: strided spatial positions (no-op slice for stride=1).
    x_s = x_nchw[:, :, ::stride, ::stride]
    Ho, Wo = x_s.shape[2], x_s.shape[3]
    HW = Ho * Wo

    # Lane-dense layout: (B, C_in, HW) -- spatial on lanes. Contiguous reshape,
    # no transpose, and crucially NO padding copy of x.
    x_flat = x_s.reshape(B, C_in, HW)

    if io_dtype is not None:
        x_flat = x_flat.astype(io_dtype)
        w_fused = w_fused.astype(io_dtype)
        out_dtype = io_dtype
    else:
        out_dtype = x_flat.dtype
    x_item = jnp.dtype(x_flat.dtype).itemsize
    o_item = jnp.dtype(out_dtype).itemsize

    # ---- spatial tile selection -------------------------------------------
    # VMEM accounting uses sublane-padded channel counts (f32 pads to 8,
    # bf16 to 16) since C_in=4 under-fills sublanes.
    c_in_pad = _round_up(C_in, 32 // x_item)
    c_out_pad = _round_up(C_out, 32 // o_item)
    vmem_budget = 16 * 1024 * 1024  # double-buffered x+out blocks
    bytes_per_lane_db = 2 * B * (c_in_pad * x_item + c_out_pad * o_item)
    cap_lanes = max(_LANE, (vmem_budget // bytes_per_lane_db) // _LANE * _LANE)
    max_t = max(_LANE, (min(max_tile_hw, cap_lanes) // _LANE) * _LANE)

    if HW <= max_t:
        if HW >= _MIN_HW_TILES * _LANE:
            # Split into >= 2 lane-aligned tiles so the 'parallel' grid axis
            # can shard across v7x's two TensorCores.
            tile_hw = _round_up(pl.cdiv(HW, _MIN_HW_TILES), _LANE)
        else:
            tile_hw = HW  # tiny input: one block == full extent (always legal)
    else:
        tile_hw = max_t   # multiple of 128; ragged last block is OOB-clipped
    num_hw_tiles = pl.cdiv(HW, tile_hw)
    # ------------------------------------------------------------------------

    cost = pl.CostEstimate(
        flops=2 * B * HW * C_in * C_out,
        transcendentals=0,
        bytes_accessed=(x_item * B * C_in * HW + o_item * B * C_out * HW
                        + x_item * C_out * C_in + 4 * C_out),
    )

    kernel = pl.pallas_call(
        _fused_conv_relu_kernel,
        out_shape=jax.ShapeDtypeStruct((B, C_out, HW), out_dtype),
        grid_spec=pltpu.PrefetchScalarGridSpec(
            num_scalar_prefetch=0,
            grid=(num_hw_tiles,),
            in_specs=[
                # x slab: full batch + channels, tile_hw spatial lanes.
                pl.BlockSpec((B, C_in, tile_hw), lambda j: (0, 0, j)),
                # fused W / b: constant block index -> held resident in VMEM.
                pl.BlockSpec((C_out, C_in), lambda j: (0, 0)),
                pl.BlockSpec((C_out, 1), lambda j: (0, 0)),
            ],
            out_specs=pl.BlockSpec((B, C_out, tile_hw), lambda j: (0, 0, j)),
        ),
        compiler_params=pltpu.CompilerParams(
            dimension_semantics=("parallel",),
            vmem_limit_bytes=32 * 1024 * 1024,
        ),
        cost_estimate=cost,
    )

    out = kernel(x_flat, w_fused, b_fused.reshape(C_out, 1).astype(jnp.float32))
    # (B, C_out, HW) -> NCHW; contiguous reshape, no slice, no copy.
    return out.reshape(B, C_out, Ho, Wo)


def make_params(key, c_in, c_out):
    ks = jax.random.split(key, 8)
    return {
        # Conv2d(c_in, c_out, 1) weights in PyTorch convention (c_out, c_in).
        "w_sc":  jax.random.normal(ks[0], (c_out, c_in), jnp.float32) * 0.1,
        "b_sc":  jax.random.normal(ks[1], (c_out,), jnp.float32) * 0.1,
        "bn_gamma": 1.0 + 0.1 * jax.random.normal(ks[2], (c_out,), jnp.float32),
        "bn_beta":  0.1 * jax.random.normal(ks[3], (c_out,), jnp.float32),
        "bn_mean":  0.1 * jax.random.normal(ks[4], (c_out,), jnp.float32),
        "bn_var":   jnp.abs(1.0 + 0.1 * jax.random.normal(ks[5], (c_out,), jnp.float32)),
        "w_res": jax.random.normal(ks[6], (c_out, c_in), jnp.float32) * 0.1,
        "b_res": jax.random.normal(ks[7], (c_out,), jnp.float32) * 0.1,
    }


def _reference(x_nchw, params, stride=1):
    """Pure-JAX reference mirroring the PyTorch forward (inference BN)."""
    eps = 1e-5
    x_s = x_nchw[:, :, ::stride, ::stride]
    scale = params["bn_gamma"] / jnp.sqrt(params["bn_var"] + eps)
    shift = params["bn_beta"] - params["bn_mean"] * scale
    y_sc = (jnp.einsum("bchw,oc->bohw", x_s, params["w_sc"])
            + params["b_sc"][None, :, None, None])
    y_sc = y_sc * scale[None, :, None, None] + shift[None, :, None, None]
    y_res = (jnp.einsum("bchw,oc->bohw", x_s, params["w_res"])
             + params["b_res"][None, :, None, None])
    return jnp.maximum(y_sc + y_res, 0.0)


if __name__ == "__main__":
    B, C_IN, H, W = 2, 4, 16, 16
    C_OUT, STRIDE = 8, 1

    key = jax.random.PRNGKey(0)
    kx, kp = jax.random.split(key)
    x = jax.random.normal(kx, (B, C_IN, H, W), jnp.float32)
    params = make_params(kp, C_IN, C_OUT)

    fn = jax.jit(functools.partial(sum_and_relu, stride=STRIDE))
    out = jax.block_until_ready(fn(x, params))

    ref = _reference(x, params, stride=STRIDE)
    assert out.shape == (B, C_OUT, H, W), out.shape
    assert jnp.allclose(out, ref, atol=1e-5, rtol=1e-5), "mismatch vs reference"

    print("KERNEL_OK")
</pallas_src>

<mosaic_0001>
module attributes {stable_mosaic.version = 11 : i64} {
  func.func @_fused_conv_relu_kernel(%arg0: i32, %arg1: memref<2x4x128xf32, #tpu.memory_space<vmem>>, %arg2: memref<8x4xf32, #tpu.memory_space<vmem>>, %arg3: memref<8x1xf32, #tpu.memory_space<vmem>>, %arg4: memref<2x8x128xf32, #tpu.memory_space<vmem>>) attributes {dimension_semantics = [#tpu.dimension_semantics<parallel>], iteration_bounds = array<i64: 2>, scalar_prefetch = 0 : i64, scratch_operands = 0 : i64, tpu.core_type = #tpu.core_type<tc>, window_params = [{transform_indices = @transform_0, window_bounds = array<i64: 2, 4, 128>}, {pipeline_mode = #tpu.pipeline_mode<synchronous>, transform_indices = @transform_1, window_bounds = array<i64: 8, 4>}, {pipeline_mode = #tpu.pipeline_mode<synchronous>, transform_indices = @transform_2, window_bounds = array<i64: 8, 1>}, {transform_indices = @transform_3, window_bounds = array<i64: 2, 8, 128>}]} {
    %c0 = arith.constant 0 : index
    %c0_0 = arith.constant 0 : index
    %0 = vector.load %arg2[%c0, %c0_0] : memref<8x4xf32, #tpu.memory_space<vmem>>, vector<8x4xf32>
    %c0_1 = arith.constant 0 : index
    %c0_2 = arith.constant 0 : index
    %1 = vector.load %arg3[%c0_1, %c0_2] : memref<8x1xf32, #tpu.memory_space<vmem>>, vector<8x1xf32>
    %c0_3 = arith.constant 0 : index
    %c0_4 = arith.constant 0 : index
    %c0_5 = arith.constant 0 : index
    %2 = vector.load %arg1[%c0_3, %c0_4, %c0_5] : memref<2x4x128xf32, #tpu.memory_space<vmem>>, vector<1x4x128xf32>
    %3 = vector.shape_cast %2 : vector<1x4x128xf32> to vector<4x128xf32>
    %cst = arith.constant dense<0.000000e+00> : vector<8x128xf32>
    %4 = tpu.matmul %0, %3, %cst {dimension_numbers = #tpu.dot_dimension_numbers<[1], [0], [0], [1], [0, 0, 1, 1], [], []>} : vector<8x4xf32>, vector<4x128xf32>, vector<8x128xf32> -> vector<8x128xf32>
    %5 = vector.broadcast %1 : vector<8x1xf32> to vector<8x128xf32>
    %6 = arith.addf %4, %5 : vector<8x128xf32>
    %cst_6 = arith.constant 0.000000e+00 : f32
    %7 = vector.broadcast %cst_6 : f32 to vector<8x128xf32>
    %8 = arith.maximumf %6, %7 : vector<8x128xf32>
    %c0_7 = arith.constant 0 : index
    %c0_8 = arith.constant 0 : index
    %c0_9 = arith.constant 0 : index
    %9 = vector.load %arg4[%c0_7, %c0_8, %c0_9] : memref<2x8x128xf32, #tpu.memory_space<vmem>>, vector<1x8x128xf32>
    %10 = vector.shape_cast %9 : vector<1x8x128xf32> to vector<8x128xf32>
    %11 = vector.shape_cast %8 : vector<8x128xf32> to vector<1x8x128xf32>
    tpu.vector_store %arg4[%c0_7, %c0_8, %c0_9], %11 {strides = array<i32>} : memref<2x8x128xf32, #tpu.memory_space<vmem>>, vector<1x8x128xf32>,
    %c1 = arith.constant 1 : index
    %c0_10 = arith.constant 0 : index
    %c0_11 = arith.constant 0 : index
    %12 = vector.load %arg1[%c1, %c0_10, %c0_11] : memref<2x4x128xf32, #tpu.memory_space<vmem>>, vector<1x4x128xf32>
    %13 = vector.shape_cast %12 : vector<1x4x128xf32> to vector<4x128xf32>
    %cst_12 = arith.constant dense<0.000000e+00> : vector<8x128xf32>
    %14 = tpu.matmul %0, %13, %cst_12 {dimension_numbers = #tpu.dot_dimension_numbers<[1], [0], [0], [1], [0, 0, 1, 1], [], []>} : vector<8x4xf32>, vector<4x128xf32>, vector<8x128xf32> -> vector<8x128xf32>
    %15 = vector.broadcast %1 : vector<8x1xf32> to vector<8x128xf32>
    %16 = arith.addf %14, %15 : vector<8x128xf32>
    %cst_13 = arith.constant 0.000000e+00 : f32
    %17 = vector.broadcast %cst_13 : f32 to vector<8x128xf32>
    %18 = arith.maximumf %16, %17 : vector<8x128xf32>
    %c1_14 = arith.constant 1 : index
    %c0_15 = arith.constant 0 : index
    %c0_16 = arith.constant 0 : index
    %19 = vector.load %arg4[%c1_14, %c0_15, %c0_16] : memref<2x8x128xf32, #tpu.memory_space<vmem>>, vector<1x8x128xf32>
    %20 = vector.shape_cast %19 : vector<1x8x128xf32> to vector<8x128xf32>
    %21 = vector.shape_cast %18 : vector<8x128xf32> to vector<1x8x128xf32>
    tpu.vector_store %arg4[%c1_14, %c0_15, %c0_16], %21 {strides = array<i32>} : memref<2x8x128xf32, #tpu.memory_space<vmem>>, vector<1x8x128xf32>,
    return
  }
  func.func @transform_0(%arg0: i32) -> (i32, i32, i32) {
    %c0_i32 = arith.constant 0 : i32
    %c0_i32_0 = arith.constant 0 : i32
    %c0_i32_1 = arith.constant 0 : i32
    return %c0_i32, %c0_i32_0, %arg0 : i32, i32, i32
  }
  func.func @transform_1(%arg0: i32) -> (i32, i32) {
    %c0_i32 = arith.constant 0 : i32
    %c0_i32_0 = arith.constant 0 : i32
    %c0_i32_1 = arith.constant 0 : i32
    return %c0_i32, %c0_i32_0 : i32, i32
  }
  func.func @transform_2(%arg0: i32) -> (i32, i32) {
    %c0_i32 = arith.constant 0 : i32
    %c0_i32_0 = arith.constant 0 : i32
    %c0_i32_1 = arith.constant 0 : i32
    return %c0_i32, %c0_i32_0 : i32, i32
  }
  func.func @transform_3(%arg0: i32) -> (i32, i32, i32) {
    %c0_i32 = arith.constant 0 : i32
    %c0_i32_0 = arith.constant 0 : i32
    %c0_i32_1 = arith.constant 0 : i32
    return %c0_i32, %c0_i32_0, %arg0 : i32, i32, i32
  }
}

</mosaic_0001>

<llo_original>
// kernel: sum_and_relu.1
$region0: #{sum_and_relu.1}
  #allocation0 [shape = 'u32[]', space=smem, size = 0x4, offset = 0x4, fixed_abs, tag = 'smem constant byte address 0x4 - core index']
  #allocation1 [shape = 'u32[72,128]{1,0:T(1,128)}', space=vmem, size = 0x9000, scoped, tag = 'internal scratch']
  %s0 = inlined_call_operand.vmem [shape: f32[2,4,256], index: 0, kind: input, shape index: {}]
  %s1 = inlined_call_operand.vmem [shape: f32[8,4], index: 1, kind: input, shape index: {}]
  %s2 = inlined_call_operand.vmem [shape: f32[8,1], index: 2, kind: input, shape index: {}]
  %s3 = inlined_call_operand.vmem [shape: f32[2,8,256], index: 3, kind: output, shape index: {}]
  %s4 = sld [smem:[#allocation0]]
  $region120: #{sum_and_relu.1} parent=0
    _
  %s6 = ssub.s32 1, %s4
  %s7 = scalar_select 0, %s6, %s4
  $region1: #{sum_and_relu.1} parent=0
    #allocation2 [shape = 'u8[8192]{0}', space=vmem, size = 0x2000, scoped, tag = 'input window, operand 0']
    #allocation3 [shape = 'u8[16384]{0}', space=vmem, size = 0x4000, scoped, tag = 'output window, operand 0']
    loop: start=0, step=1, limit=4
    $region2: #{sum_and_relu.1} parent=1 // loop_pre_header
      _
    $region3: #{sum_and_relu.1} parent=1 // loop_header
      %s9 = sphi 0, %s13
      %p10 = scmp.ge.s32.totalorder %s9, 4
      %s19 = sphi 0, %s21
      %s22 = sphi 0, %s19
      %s23 = sphi 0, %s22
      %s39 = sphi 0, %s23
      %s43 = sphi 0, %s43
      %s45 = sphi 0, %s43
      %s46 = sphi 0, %s45
      %s60 = sphi 0, %s46
      %s64 = sphi 0, %s64
      %s66 = sphi 0, %s64
      %s67 = sphi 0, %s66
      %s81 = sphi 0, %s67
      %s87 = sphi 0, %s89
      %s90 = sphi 0, %s87
      %s91 = sphi 0, %s90
      %s107 = sphi 0, %s91
    $region4: #{sum_and_relu.1} parent=1 // loop_header_branch
      %12 = sbr.rel (%p10) target = $region8
    $region5: #{sum_and_relu.1} parent=1 // loop_body
      %s14 = ssub.s32 %s9, 1
      %s15 = ssub.s32 %s9, 2
      %s16 = sadd.s32 %s9, 1
      %s17 = ssub.s32 %s9, %s16
      %p18 = scmp.eq.s32.totalorder %s17, 0
      %s20 = sadd.s32 %s19, 1
      %s21 = scalar_select %p18, %s19, %s20
      %p24 = pneg %p18
      %p25 = scmp.eq.s32.totalorder %s9, 1
      %p26 = por %p24, %p25
      %p27 = scmp.ne.s32.totalorder %s19, %s22
      %p28 = scmp.eq.s32.totalorder %s9, 0
      %p29 = por %p27, %p28
      %p30 = scmp.ne.s32.totalorder %s19, %s22
      %p31 = scmp.eq.s32.totalorder %s14, 1
      %p32 = por %p30, %p31
      %p33 = scmp.ne.s32.totalorder %s22, %s23
      %p34 = scmp.eq.s32.totalorder %s14, 0
      %p35 = por %p33, %p34
      %p36 = scmp.ne.s32.totalorder %s22, %s23
      %p37 = scmp.eq.s32.totalorder %s15, 1
      %p38 = por %p36, %p37
      %p40 = scmp.ne.s32.totalorder %s23, %s39
      %p41 = scmp.eq.s32.totalorder %s15, 0
      %p42 = por %p40, %p41
      %s44 = sadd.s32 %s43, 1
      %p47 = scmp.eq.s32.totalorder %s9, 1
      %p48 = scmp.ne.s32.totalorder %s43, %s45
      %p49 = scmp.eq.s32.totalorder %s9, 0
      %p50 = por %p48, %p49
      %p51 = scmp.ne.s32.totalorder %s43, %s45
      %p52 = scmp.eq.s32.totalorder %s14, 1
      %p53 = por %p51, %p52
      %p54 = scmp.ne.s32.totalorder %s45, %s46
      %p55 = scmp.eq.s32.totalorder %s14, 0
      %p56 = por %p54, %p55
      %p57 = scmp.ne.s32.totalorder %s45, %s46
      %p58 = scmp.eq.s32.totalorder %s15, 1
      %p59 = por %p57, %p58
      %p61 = scmp.ne.s32.totalorder %s46, %s60
      %p62 = scmp.eq.s32.totalorder %s15, 0
      %p63 = por %p61, %p62
      %s65 = sadd.s32 %s64, 1
      %p68 = scmp.eq.s32.totalorder %s9, 1
      %p69 = scmp.ne.s32.totalorder %s64, %s66
      %p70 = scmp.eq.s32.totalorder %s9, 0
      %p71 = por %p69, %p70
      %p72 = scmp.ne.s32.totalorder %s64, %s66
      %p73 = scmp.eq.s32.totalorder %s14, 1
      %p74 = por %p72, %p73
      %p75 = scmp.ne.s32.totalorder %s66, %s67
      %p76 = scmp.eq.s32.totalorder %s14, 0
      %p77 = por %p75, %p76
      %p78 = scmp.ne.s32.totalorder %s66, %s67
      %p79 = scmp.eq.s32.totalorder %s15, 1
      %p80 = por %p78, %p79
      %p82 = scmp.ne.s32.totalorder %s67, %s81
      %p83 = scmp.eq.s32.totalorder %s15, 0
      %p84 = por %p82, %p83
      %s85 = ssub.s32 %s9, %s16
      %p86 = scmp.eq.s32.totalorder %s85, 0
      %s88 = sadd.s32 %s87, 1
      %s89 = scalar_select %p86, %s87, %s88
      %p92 = pneg %p86
      %p93 = scmp.eq.s32.totalorder %s9, 1
      %p94 = por %p92, %p93
      %p95 = scmp.ne.s32.totalorder %s87, %s90
      %p96 = scmp.eq.s32.totalorder %s9, 0
      %p97 = por %p95, %p96
      %p98 = scmp.ne.s32.totalorder %s87, %s90
      %p99 = scmp.eq.s32.totalorder %s14, 1
      %p100 = por %p98, %p99
      %p101 = scmp.ne.s32.totalorder %s90, %s91
      %p102 = scmp.eq.s32.totalorder %s14, 0
      %p103 = por %p101, %p102
      %p104 = scmp.ne.s32.totalorder %s90, %s91
      %p105 = scmp.eq.s32.totalorder %s15, 1
      %p106 = por %p104, %p105
      %p108 = scmp.ne.s32.totalorder %s91, %s107
      %p109 = scmp.eq.s32.totalorder %s15, 0
      %p110 = por %p108, %p109
      %p111 = scmp.le.s32.totalorder 1, %s9
      %p112 = scmp.lt.s32.totalorder %s9, 3
      %p113 = pnand %p111, %p112
      %p114 = pneg %p113
      // Predicated region
      $region9: #{sum_and_relu.1} parent=5 // pred_check
        _
      $region10: #{sum_and_relu.1} parent=5 // pred_check_branch
        %116 = sbr.rel (%p113) target = $region12
      $region11: #{sum_and_relu.1} parent=5 // pred_region
        %s117 = ssub.s32 %s9, 1
        // Predicated region
        $region13: #{sum_and_relu.1} parent=11 // pred_check
          %p118 = pneg %p56
        $region14: #{sum_and_relu.1} parent=11 // pred_check_branch
          %120 = sbr.rel (%p118) target = $region16
        $region15: #{sum_and_relu.1} parent=11 // pred_region
          _
        $region16: #{sum_and_relu.1} parent=11 // pred_fallthru
          _
        // Predicated region
        $region17: #{sum_and_relu.1} parent=11 // pred_check
          %p121 = pneg %p77
        $region18: #{sum_and_relu.1} parent=11 // pred_check_branch
          %123 = sbr.rel (%p121) target = $region20
        $region19: #{sum_and_relu.1} parent=11 // pred_region
          _
        $region20: #{sum_and_relu.1} parent=11 // pred_fallthru
          _
      $region12: #{sum_and_relu.1} parent=5 // pred_fallthru
        _
      %p124 = scmp.lt.s32.totalorder %s9, 2
      // Predicated region
      $region21: #{sum_and_relu.1} parent=5 // pred_check
        %p125 = pneg %p124
      $region22: #{sum_and_relu.1} parent=5 // pred_check_branch
        %127 = sbr.rel (%p125) target = $region24
      $region23: #{sum_and_relu.1} parent=5 // pred_region
        // Predicated region
        $region25: #{sum_and_relu.1} parent=23 // pred_check
          %p128 = pneg %p29
        $region26: #{sum_and_relu.1} parent=23 // pred_check_branch
          %130 = sbr.rel (%p128) target = $region28
        $region27: #{sum_and_relu.1} parent=23 // pred_region
          %s131 = sand.u32 %s19, 1
          %s132 = sand.u32 %s19, 1
          %s133 = smul.addr %s132, 8
          %s134 = scalar_lea.vmem [#allocation2], %s133
          %s135 = smul.addr %s9, 4
          %s136 = scalar_lea.vmem %s0, %s135
          // Predicated region
          $region29: #{sum_and_relu.1} parent=27 // pred_check
            _
          $region30: #{sum_and_relu.1} parent=27 // pred_check_branch
            %138 = sbr.rel (0) target = $region32
          $region31: #{sum_and_relu.1} parent=27 // pred_region
            // Predicated region
            $region33: #{sum_and_relu.1} parent=31 // pred_check
              _
            $region34: #{sum_and_relu.1} parent=31 // pred_check_branch
              %140 = sbr.rel target = $region36
            $region35: #{sum_and_relu.1} parent=31 // pred_region
              // Predicated region
              $region48: #{sum_and_relu.1} parent=35 // pred_check
                _
              $region49: #{sum_and_relu.1} parent=35 // pred_check_branch
                %158 = sbr.rel (0) target = $region51
              $region50: #{sum_and_relu.1} parent=35 // pred_region
                loop: start=0, step=1, limit=1
                $region52: #{sum_and_relu.1} parent=50 // loop_pre_header
                  _
                $region53: #{sum_and_relu.1} parent=50 // loop_header
                  %s160 = sphi 0, %s164
                  %p161 = scmp.ge.s32.totalorder %s160, 1
                  %s165 = sphi %s136, %s136
                  %s166 = sphi %s134, %s134
                $region54: #{sum_and_relu.1} parent=50 // loop_header_branch
                  %163 = sbr.rel (%p161) target = $region58
                $region55: #{sum_and_relu.1} parent=50 // loop_body
                  _
                $region56: #{sum_and_relu.1} parent=50 // loop_footer
                  %s164 = sadd.s32 1, %s160
                $region57: #{sum_and_relu.1} parent=50 // loop_footer_branch
                  %159 = sbr.rel target = $region53
                $region58: #{sum_and_relu.1} parent=50 // loop_exit
                  _
                %s168 = ssub.s32 16, 1
                loop: start=0, step=1, limit=1
                $region59: #{sum_and_relu.1} parent=50 // loop_pre_header
                  _
                $region60: #{sum_and_relu.1} parent=50 // loop_header
                  %s170 = sphi 0, %s174
                  %p171 = scmp.ge.s32.totalorder %s170, 1
                  %s175 = sphi %s136, %s136
                  %s176 = sphi %s134, %s134
                $region61: #{sum_and_relu.1} parent=50 // loop_header_branch
                  %173 = sbr.rel (%p171) target = $region65
                $region62: #{sum_and_relu.1} parent=50 // loop_body
                  %v177 = vld [vmem:[%s175] sm:%s168]
                  %178 = vst [vmem:[%s176] sm:%s168] %v177
                  %v179 = vld [vmem:[%s175 + $0x8] sm:%s168]
                  %180 = vst [vmem:[%s176 + $0x4] sm:%s168] %v179
                $region63: #{sum_and_relu.1} parent=50 // loop_footer
                  %s174 = sadd.s32 1, %s170
                $region64: #{sum_and_relu.1} parent=50 // loop_footer_branch
                  %169 = sbr.rel target = $region60
                $region65: #{sum_and_relu.1} parent=50 // loop_exit
                  _
              $region51: #{sum_and_relu.1} parent=35 // pred_fallthru
                _
            $region36: #{sum_and_relu.1} parent=31 // pred_fallthru
              _
            // Predicated region
            $region37: #{sum_and_relu.1} parent=31 // pred_check
              _
            $region38: #{sum_and_relu.1} parent=31 // pred_check_branch
              %142 = sbr.rel (0) target = $region40
            $region39: #{sum_and_relu.1} parent=31 // pred_region
              %s144 = ssub.s32 16, 1
              loop: start=0, step=1, limit=1
              $region41: #{sum_and_relu.1} parent=39 // loop_pre_header
                _
              $region42: #{sum_and_relu.1} parent=39 // loop_header
                %s146 = sphi 0, %s150
                %p147 = scmp.ge.s32.totalorder %s146, 1
                %s151 = sphi %s136, %s136
                %s152 = sphi %s134, %s134
              $region43: #{sum_and_relu.1} parent=39 // loop_header_branch
                %149 = sbr.rel (%p147) target = $region47
              $region44: #{sum_and_relu.1} parent=39 // loop_body
                %v153 = vld [vmem:[%s151] sm:%s144]
                %154 = vst [vmem:[%s152] sm:%s144] %v153
                %v155 = vld [vmem:[%s151 + $0x8] sm:%s144]
                %156 = vst [vmem:[%s152 + $0x4] sm:%s144] %v155
              $region45: #{sum_and_relu.1} parent=39 // loop_footer
                %s150 = sadd.s32 1, %s146
              $region46: #{sum_and_relu.1} parent=39 // loop_footer_branch
                %145 = sbr.rel target = $region42
              $region47: #{sum_and_relu.1} parent=39 // loop_exit
                _
            $region40: #{sum_and_relu.1} parent=31 // pred_fallthru
              _
          $region32: #{sum_and_relu.1} parent=27 // pred_fallthru
            _
          %181 = vnop
        $region28: #{sum_and_relu.1} parent=23 // pred_fallthru
          _
      $region24: #{sum_and_relu.1} parent=5 // pred_fallthru
        _
      %p182 = scmp.le.s32.totalorder 1, %s9
      %p183 = scmp.lt.s32.totalorder %s9, 3
      %p184 = pnand %p182, %p183
      %p185 = pneg %p184
      // Predicated region
      $region66: #{sum_and_relu.1} parent=5 // pred_check
        _
      $region67: #{sum_and_relu.1} parent=5 // pred_check_branch
        %187 = sbr.rel (%p184) target = $region69
      $region68: #{sum_and_relu.1} parent=5 // pred_region
        %s188 = ssub.s32 %s9, 1
        %s189 = sand.u32 %s22, 1
        %s190 = sand.u32 %s22, 1
        %s191 = smul.addr %s190, 8
        %s192 = scalar_lea.vmem [#allocation2], %s191
        // Predicated region
        $region70: #{sum_and_relu.1} parent=68 // pred_check
          %p193 = pneg %p35
        $region71: #{sum_and_relu.1} parent=68 // pred_check_branch
          %195 = sbr.rel (%p193) target = $region73
        $region72: #{sum_and_relu.1} parent=68 // pred_region
          _
        $region73: #{sum_and_relu.1} parent=68 // pred_fallthru
          _
        %s196 = sand.u32 %s22, 1
        %s197 = sand.u32 %s22, 1
        %s198 = smul.addr %s197, 8
        %s199 = scalar_lea.vmem [#allocation2], %s198
        %p200 = pneg %p35
        %p201 = pneg %p32
        %p202 = pneg %p56
        %p203 = pneg %p53
        %p204 = pneg %p77
        %p205 = pneg %p74
        %p206 = pneg %p103
        %p207 = pneg %p100
        %s208 = sand.u32 %s90, 1
        %s209 = sand.u32 %s90, 1
        %s210 = smul.addr %s209, 16
        %s211 = scalar_lea.vmem [#allocation3], %s210
        %v212 = vld [vmem:[%s1] sm:$0xff]
        %v213 = vld [vmem:[%s2] sm:$0xff]
        %v214 = vld [vmem:[%s192] sm:$0xf]
        %216 = vset.pattern.permute.xlu0 0
        %217 = vperm.xlu0 %216, %v213
        %v218 = vpop.permute.xlu0 %217
        %vm220 = vcmask 31744
        %v222 = vsel %vm220, %v212, 0
        %vm224 = vcmask 1043456
        %v226 = vsel %vm224, %v214, 0
        %228 = vmatpush.msra.mxu0 0.0
        %229 = vmatpush.msra.mxu0 0.0
        %230 = vmatpush.msra.mxu0 0.0
        %231 = vmatpush.msra.mxu0 0.0
        %232 = vmatpush.msra.mxu0 0.0
        %233 = vmatpush.msra.mxu0 0.0
        %234 = vmatpush.msra.mxu0 0.0
        %235 = vmatpush.msra.mxu0 0.0
        %236 = vmatpush.msra.mxu0 0.0
        %237 = vmatpush.msra.mxu0 0.0
        %238 = vmatpush.msra.mxu0 0.0
        %239 = vmatpush.msra.mxu0 0.0
        %240 = vmatpush.msra.mxu0 0.0
        %241 = vmatpush.msra.mxu0 0.0
        %242 = vmatpush.msra.mxu0 0.0
        %243 = vmatpush.msra.mxu0 %v226
        %244 = vmatmul.f32.gmra.mxu0 %v222
        %v245 = vpop.f32.mrf.mxu0
        %v246 = vadd.f32 %v218, %v245
        %247 = vdwg.mxu0
        %v248 = vmax.f32 %v246, 0.0
        %249 = vst [vmem:[%s211] sm:$0xff] %v248
        %s250 = scalar_lea.vmem %s192, 4 [#allocation2]
        %v251 = vld [vmem:[%s250] sm:$0xf]
        %v253 = vsel %vm224, %v251, 0
        %255 = vmatpush.msra.mxu0 0.0
        %256 = vmatpush.msra.mxu0 0.0
        %257 = vmatpush.msra.mxu0 0.0
        %258 = vmatpush.msra.mxu0 0.0
        %259 = vmatpush.msra.mxu0 0.0
        %260 = vmatpush.msra.mxu0 0.0
        %261 = vmatpush.msra.mxu0 0.0
        %262 = vmatpush.msra.mxu0 0.0
        %263 = vmatpush.msra.mxu0 0.0
        %264 = vmatpush.msra.mxu0 0.0
        %265 = vmatpush.msra.mxu0 0.0
        %266 = vmatpush.msra.mxu0 0.0
        %267 = vmatpush.msra.mxu0 0.0
        %268 = vmatpush.msra.mxu0 0.0
        %269 = vmatpush.msra.mxu0 0.0
        %270 = vmatpush.msra.mxu0 %v253
        %271 = vmatmul.f32.gmra.mxu0 %v222
        %v272 = vpop.f32.mrf.mxu0
        %v273 = vadd.f32 %v218, %v272
        %274 = vdwg.mxu0
        %v275 = vmax.f32 %v273, 0.0
        %s276 = scalar_lea.vmem %s211, 8 [#allocation3]
        %277 = vst [vmem:[%s276] sm:$0xff] %v275
        %s278 = sand.u32 %s90, 1
        %s279 = sand.u32 %s90, 1
        %s280 = smul.addr %s279, 16
        %s281 = scalar_lea.vmem [#allocation3], %s280
        // Predicated region
        $region74: #{sum_and_relu.1} parent=68 // pred_check
          %p282 = pneg %p100
        $region75: #{sum_and_relu.1} parent=68 // pred_check_branch
          %284 = sbr.rel (%p282) target = $region77
        $region76: #{sum_and_relu.1} parent=68 // pred_region
          %s285 = smul.addr %s14, 8
          %s286 = scalar_lea.vmem %s3, %s285
          // Predicated region
          $region78: #{sum_and_relu.1} parent=76 // pred_check
            _
          $region79: #{sum_and_relu.1} parent=76 // pred_check_branch
            %288 = sbr.rel (0) target = $region81
          $region80: #{sum_and_relu.1} parent=76 // pred_region
            // Predicated region
            $region82: #{sum_and_relu.1} parent=80 // pred_check
              _
            $region83: #{sum_and_relu.1} parent=80 // pred_check_branch
              %290 = sbr.rel (0) target = $region85
            $region84: #{sum_and_relu.1} parent=80 // pred_region
              // Predicated region
              $region97: #{sum_and_relu.1} parent=84 // pred_check
                _
              $region98: #{sum_and_relu.1} parent=84 // pred_check_branch
                %308 = sbr.rel (0) target = $region100
              $region99: #{sum_and_relu.1} parent=84 // pred_region
                loop: start=0, step=1, limit=1
                $region101: #{sum_and_relu.1} parent=99 // loop_pre_header
                  _
                $region102: #{sum_and_relu.1} parent=99 // loop_header
                  %s310 = sphi 0, %s314
                  %p311 = scmp.ge.s32.totalorder %s310, 1
                  %s315 = sphi %s281, %s281
                  %s316 = sphi %s286, %s286
                $region103: #{sum_and_relu.1} parent=99 // loop_header_branch
                  %313 = sbr.rel (%p311) target = $region107
                $region104: #{sum_and_relu.1} parent=99 // loop_body
                  %v317 = vld [vmem:[%s315] sm:$0xff]
                  %318 = vst [vmem:[%s316] sm:$0xff] %v317
                  %v319 = vld [vmem:[%s315 + $0x8] sm:$0xff]
                  %320 = vst [vmem:[%s316 + $0x10] sm:$0xff] %v319
                $region105: #{sum_and_relu.1} parent=99 // loop_footer
                  %s314 = sadd.s32 1, %s310
                $region106: #{sum_and_relu.1} parent=99 // loop_footer_branch
                  %309 = sbr.rel target = $region102
                $region107: #{sum_and_relu.1} parent=99 // loop_exit
                  _
              $region100: #{sum_and_relu.1} parent=84 // pred_fallthru
                _
              // Predicated region
              $region108: #{sum_and_relu.1} parent=84 // pred_check
                _
              $region109: #{sum_and_relu.1} parent=84 // pred_check_branch
                %322 = sbr.rel target = $region111
              $region110: #{sum_and_relu.1} parent=84 // pred_region
                _
              $region111: #{sum_and_relu.1} parent=84 // pred_fallthru
                _
            $region85: #{sum_and_relu.1} parent=80 // pred_fallthru
              _
            // Predicated region
            $region86: #{sum_and_relu.1} parent=80 // pred_check
              _
            $region87: #{sum_and_relu.1} parent=80 // pred_check_branch
              %292 = sbr.rel target = $region89
            $region88: #{sum_and_relu.1} parent=80 // pred_region
              %s294 = ssub.s32 256, 1
              loop: start=0, step=1, limit=1
              $region90: #{sum_and_relu.1} parent=88 // loop_pre_header
                _
              $region91: #{sum_and_relu.1} parent=88 // loop_header
                %s296 = sphi 0, %s300
                %p297 = scmp.ge.s32.totalorder %s296, 1
                %s301 = sphi %s281, %s281
                %s302 = sphi %s286, %s286
              $region92: #{sum_and_relu.1} parent=88 // loop_header_branch
                %299 = sbr.rel (%p297) target = $region96
              $region93: #{sum_and_relu.1} parent=88 // loop_body
                %v303 = vld [vmem:[%s301] sm:%s294]
                %304 = vst [vmem:[%s302] sm:%s294] %v303
                %v305 = vld [vmem:[%s301 + $0x8] sm:%s294]
                %306 = vst [vmem:[%s302 + $0x10] sm:%s294] %v305
              $region94: #{sum_and_relu.1} parent=88 // loop_footer
                %s300 = sadd.s32 1, %s296
              $region95: #{sum_and_relu.1} parent=88 // loop_footer_branch
                %295 = sbr.rel target = $region91
              $region96: #{sum_and_relu.1} parent=88 // loop_exit
                _
            $region89: #{sum_and_relu.1} parent=80 // pred_fallthru
              _
          $region81: #{sum_and_relu.1} parent=76 // pred_fallthru
            _
          %323 = vnop
        $region77: #{sum_and_relu.1} parent=68 // pred_fallthru
          _
      $region69: #{sum_and_relu.1} parent=5 // pred_fallthru
        _
      %p324 = scmp.le.s32.totalorder 2, %s9
      // Predicated region
      $region112: #{sum_and_relu.1} parent=5 // pred_check
        %p325 = pneg %p324
      $region113: #{sum_and_relu.1} parent=5 // pred_check_branch
        %327 = sbr.rel (%p325) target = $region115
      $region114: #{sum_and_relu.1} parent=5 // pred_region
        %s328 = ssub.s32 %s9, 2
        // Predicated region
        $region116: #{sum_and_relu.1} parent=114 // pred_check
          %p329 = pneg %p106
        $region117: #{sum_and_relu.1} parent=114 // pred_check_branch
          %331 = sbr.rel (%p329) target = $region119
        $region118: #{sum_and_relu.1} parent=114 // pred_region
          %s332 = sand.u32 %s91, 1
          %s333 = sand.u32 %s91, 1
          %s334 = smul.addr %s333, 16
          %s335 = scalar_lea.vmem [#allocation3], %s334
        $region119: #{sum_and_relu.1} parent=114 // pred_fallthru
          _
      $region115: #{sum_and_relu.1} parent=5 // pred_fallthru
        _
    $region6: #{sum_and_relu.1} parent=1 // loop_footer
      %s13 = sadd.s32 1, %s9
    $region7: #{sum_and_relu.1} parent=1 // loop_footer_branch
      %8 = sbr.rel target = $region3
    $region8: #{sum_and_relu.1} parent=1 // loop_exit
      _

</llo_original>
